<compile_context>
chip_gen: v7x
topology: tpu7x:2x2x1
jax: 0.10.0
libtpu: 0.0.40
codegen_flags: <defaults>
</compile_context>

<pallas_src>
import functools

import jax
import jax.numpy as jnp
from jax.experimental import pallas as pl
from jax.experimental.pallas import tpu as pltpu

BN_EPS = 1e-5


# ---------------------------------------------------------------------------
# VMEM budgeting / tile selection
# ---------------------------------------------------------------------------

def _vmem_budget_bytes():
    """Physical VMEM of this generation minus headroom (v7x-safe fallback)."""
    phys = 64 << 20  # conservative default: v7x has 64 MiB per TensorCore
    try:
        info = pltpu.get_tpu_info()
        cap = getattr(info, "vmem_capacity_bytes", None)
        if cap:
            phys = int(cap)
    except Exception:
        pass
    return (phys * 3) // 4  # leave 25% headroom for compiler temporaries


def _residency_bytes(B, tk, tn, K, out_itemsize):
    full_k = (tk == K)
    return (
        2 * B * tk * 2                       # x tile, double-buffered, bf16
        + 2 * tk * tn * 2                    # weight tile, double-buffered, bf16
        + 2 * 2 * tn * 4                     # stacked [gamma; beta] tile, f32
        + 2 * B * tn * out_itemsize          # output tile, double-buffered
        + (0 if full_k else B * tn * 4)      # f32 accumulator scratch (tiled-K)
    )


def _pick_tiles(B, K, N, out_itemsize, budget):
    """Choose (tn, tk). Prefer full-K (no reduction axis) and >=2 N-tiles."""
    # tn <= 512 with at least 2 (SimSiam: 4) output blocks keeps both v7x TCs busy.
    tn_opts = [t for t in (512, 256, 128) if N % t == 0 and N // t >= 2] or [N]
    # Prefer the full K (drops the reduction grid axis + accumulator entirely).
    tk_opts = [K] + [t for t in (2048, 1024, 512, 256, 128) if t < K and K % t == 0]
    for tn in tn_opts:
        for tk in tk_opts:
            need = _residency_bytes(B, tk, tn, K, out_itemsize)
            if need <= budget:
                return tn, tk, need
    tn, tk = tn_opts[-1], tk_opts[-1]
    return tn, tk, _residency_bytes(B, tk, tn, K, out_itemsize)


# ---------------------------------------------------------------------------
# Kernels
# ---------------------------------------------------------------------------

def _bn_epilogue(h, gb_ref, relu):
    """Training-mode BN folded into one scale/shift over the [B, tn] tile.

    The Linear bias is dropped: it is exactly cancelled by the mean
    subtraction.  var = E[h^2] - E[h]^2 saves a full-tile subtract pass vs.
    mean((h - mean)**2); the max(., 0) guard is on the tiny [1, tn] row only.
    """
    mean = jnp.mean(h, axis=0, keepdims=True)                     # [1, tn]
    var = jnp.mean(h * h, axis=0, keepdims=True) - mean * mean    # biased (PyTorch fwd)
    var = jnp.maximum(var, 0.0)
    scale = gb_ref[0:1, :] * jax.lax.rsqrt(var + BN_EPS)
    shift = gb_ref[1:2, :] - mean * scale
    y = h * scale + shift
    if relu:
        y = jnp.maximum(y, 0.0)
    return y


def _linear_bn_fullk_kernel(x_ref, w_ref, gb_ref, o_ref, *, relu):
    """Full-K path: one MXU pass per output-feature tile, no accumulator."""
    h = jnp.dot(x_ref[...], w_ref[...], preferred_element_type=jnp.float32)
    o_ref[...] = _bn_epilogue(h, gb_ref, relu).astype(o_ref.dtype)


def _linear_bn_tiledk_kernel(x_ref, w_ref, gb_ref, o_ref, acc_ref, *, relu):
    """Fallback for very large B*K: K-tiled reduction into a f32 accumulator."""
    k = pl.program_id(1)

    @pl.when(k == 0)
    def _():
        acc_ref[...] = jnp.zeros_like(acc_ref)

    acc_ref[...] += jnp.dot(x_ref[...], w_ref[...],
                            preferred_element_type=jnp.float32)

    @pl.when(k == pl.num_programs(1) - 1)
    def _():
        o_ref[...] = _bn_epilogue(acc_ref[...], gb_ref, relu).astype(o_ref.dtype)


# ---------------------------------------------------------------------------
# Wrapper
# ---------------------------------------------------------------------------

def _linear_bn(x, w, gb, *, relu, out_dtype):
    """x:[B,K], w:[K,N] (any float dtype), gb:[2,N] f32 ([gamma; beta]) -> [B,N]."""
    B, K = x.shape
    Kw, N = w.shape
    assert K == Kw, f"shape mismatch: x {x.shape} vs w {w.shape}"
    assert gb.shape == (2, N), f"gb must be [2, N], got {gb.shape}"

    out_itemsize = jnp.dtype(out_dtype).itemsize
    budget = _vmem_budget_bytes()
    tn, tk, need = _pick_tiles(B, K, N, out_itemsize, budget)

    x_bf16 = x.astype(jnp.bfloat16)
    w_bf16 = w.astype(jnp.bfloat16)

    # Never request more scoped VMEM than (physical - headroom).
    vmem_limit = int(min(max(need + (4 << 20), 16 << 20), budget))

    if tk == K:
        # Single-k path: x block index is constant -> DMA'd once per layer;
        # weight tiles stream and overlap the MXU via BlockSpec pipelining.
        return pl.pallas_call(
            functools.partial(_linear_bn_fullk_kernel, relu=relu),
            out_shape=jax.ShapeDtypeStruct((B, N), out_dtype),
            grid=(N // tn,),
            in_specs=[
                pl.BlockSpec((B, K), lambda j: (0, 0)),    # x (resident)
                pl.BlockSpec((K, tn), lambda j: (0, j)),   # w (streamed)
                pl.BlockSpec((2, tn), lambda j: (0, j)),   # stacked [gamma; beta]
            ],
            out_specs=pl.BlockSpec((B, tn), lambda j: (0, j)),
            compiler_params=pltpu.CompilerParams(
                dimension_semantics=("parallel",),
                vmem_limit_bytes=vmem_limit,
            ),
        )(x_bf16, w_bf16, gb)

    # TODO(synk): for extreme B where even this residency overflows, switch the BN
    # epilogue to a two-pass scheme (per-feature sum / sum-of-squares over B tiles).
    return pl.pallas_call(
        functools.partial(_linear_bn_tiledk_kernel, relu=relu),
        out_shape=jax.ShapeDtypeStruct((B, N), out_dtype),
        grid=(N // tn, K // tk),                 # reduction axis last
        in_specs=[
            pl.BlockSpec((B, tk), lambda j, k: (0, k)),
            pl.BlockSpec((tk, tn), lambda j, k: (k, j)),
            pl.BlockSpec((2, tn), lambda j, k: (0, j)),
        ],
        out_specs=pl.BlockSpec((B, tn), lambda j, k: (0, j)),
        scratch_shapes=[pltpu.VMEM((B, tn), jnp.float32)],
        compiler_params=pltpu.CompilerParams(
            dimension_semantics=("parallel", "arbitrary"),
            vmem_limit_bytes=vmem_limit,
        ),
    )(x_bf16, w_bf16, gb)


def projection_mlp_forward(x, params):
    """x: [B, in_dim] float32.  params: dict of weights (see init_params)."""
    # Inter-layer activations stay bf16 (they feed the next bf16 MXU matmul).
    # TODO(synk): for small-batch latency, fuse the 3 blocks into one pallas_call
    # (cross-call weight prefetch); kept separate here to preserve per-layer
    # feature-parallel sharding across both v7x TensorCores.
    h1 = _linear_bn(x, params["w1"], params["gb1"], relu=True, out_dtype=jnp.bfloat16)
    h2 = _linear_bn(h1, params["w2"], params["gb2"], relu=True, out_dtype=jnp.bfloat16)
    h3 = _linear_bn(h2, params["w3"], params["gb3"], relu=False, out_dtype=x.dtype)
    return h3


# ---------------------------------------------------------------------------
# Params / reference
# ---------------------------------------------------------------------------

def init_params(key, in_dim, hidden_dim, out_dim):
    """Deterministic synthetic params; Linear weights stored as [in, out] bf16.

    Biases (b*) are kept only for the PyTorch-faithful reference; the kernel
    drops them because training-mode BN cancels them exactly.
    """
    # Layer3's BN in the PyTorch code is BatchNorm1d(hidden_dim); it only runs
    # when out_dim == hidden_dim (default SimSiam config), so require that.
    assert out_dim == hidden_dim, "layer3 BN is BatchNorm1d(hidden_dim)"
    ks = jax.random.split(key, 6)

    def lin(kw, kb, din, dout):
        bound = 1.0 / jnp.sqrt(din)
        w = jax.random.uniform(kw, (din, dout), jnp.float32, -bound, bound)
        b = jax.random.uniform(kb, (1, dout), jnp.float32, -bound, bound)
        return w.astype(jnp.bfloat16), b

    w1, b1 = lin(ks[0], ks[1], in_dim, hidden_dim)
    w2, b2 = lin(ks[2], ks[3], hidden_dim, hidden_dim)
    w3, b3 = lin(ks[4], ks[5], hidden_dim, out_dim)

    def gb(d):  # rows: [gamma; beta]
        return jnp.concatenate([jnp.ones((1, d), jnp.float32),
                                jnp.zeros((1, d), jnp.float32)], axis=0)

    return {
        "w1": w1, "b1": b1, "gb1": gb(hidden_dim),
        "w2": w2, "b2": b2, "gb2": gb(hidden_dim),
        "w3": w3, "b3": b3, "gb3": gb(out_dim),
    }


def reference_forward(x, p):
    """Pure-JAX reference mirroring PyTorch semantics (Linear with bias,
    training-mode BN with (h-mean)^2 variance), bf16 MXU inputs, f32 accumulation,
    bf16 inter-layer activations."""
    def lbn(h, w, b, gb, relu, out_dtype):
        hh = jnp.dot(h.astype(jnp.bfloat16), w.astype(jnp.bfloat16),
                     preferred_element_type=jnp.float32) + b
        m = hh.mean(0, keepdims=True)
        v = ((hh - m) ** 2).mean(0, keepdims=True)
        g, be = gb[0:1, :], gb[1:2, :]
        y = g * (hh - m) * jax.lax.rsqrt(v + BN_EPS) + be
        if relu:
            y = jnp.maximum(y, 0.0)
        return y.astype(out_dtype)

    h = lbn(x, p["w1"], p["b1"], p["gb1"], True, jnp.bfloat16)
    h = lbn(h, p["w2"], p["b2"], p["gb2"], True, jnp.bfloat16)
    h = lbn(h, p["w3"], p["b3"], p["gb3"], False, x.dtype)
    return h


if __name__ == "__main__":
    key = jax.random.PRNGKey(0)
    k_x, k_p = jax.random.split(key)

    # Small synthetic shapes (production SimSiam: B~512, in=hidden=out=2048).
    B, in_dim, hidden_dim, out_dim = 8, 64, 32, 32
    x = jax.random.normal(k_x, (B, in_dim), jnp.float32)
    params = init_params(k_p, in_dim, hidden_dim, out_dim)

    y = projection_mlp_forward(x, params)
    y = jax.block_until_ready(y)

    y_ref = reference_forward(x, params)
    assert y.shape == (B, out_dim)
    assert jnp.allclose(y, y_ref, atol=3e-2, rtol=3e-2), "mismatch vs JAX reference"

    # TODO(synk): BN running_mean/running_var updates (eval-mode stats) are not
    # produced; this kernel implements the training-mode forward only.
    print("KERNEL_OK")
</pallas_src>

<mosaic_0001>
module attributes {stable_mosaic.version = 11 : i64} {
  func.func @_linear_bn_fullk_kernel(%arg0: i32, %arg1: memref<8x64xbf16, #tpu.memory_space<vmem>>, %arg2: memref<64x32xbf16, #tpu.memory_space<vmem>>, %arg3: memref<2x32xf32, #tpu.memory_space<vmem>>, %arg4: memref<8x32xbf16, #tpu.memory_space<vmem>>) attributes {dimension_semantics = [#tpu.dimension_semantics<parallel>], iteration_bounds = array<i64: 1>, scalar_prefetch = 0 : i64, scratch_operands = 0 : i64, tpu.core_type = #tpu.core_type<tc>, window_params = [{pipeline_mode = #tpu.pipeline_mode<synchronous>, transform_indices = @transform_0, window_bounds = array<i64: 8, 64>}, {transform_indices = @transform_1, window_bounds = array<i64: 64, 32>}, {transform_indices = @transform_2, window_bounds = array<i64: 2, 32>}, {transform_indices = @transform_3, window_bounds = array<i64: 8, 32>}]} {
    %c0 = arith.constant 0 : index
    %c0_0 = arith.constant 0 : index
    %0 = vector.load %arg1[%c0, %c0_0] : memref<8x64xbf16, #tpu.memory_space<vmem>>, vector<8x64xbf16>
    %c0_1 = arith.constant 0 : index
    %c0_2 = arith.constant 0 : index
    %1 = vector.load %arg2[%c0_1, %c0_2] : memref<64x32xbf16, #tpu.memory_space<vmem>>, vector<64x32xbf16>
    %cst = arith.constant dense<0.000000e+00> : vector<8x32xf32>
    %2 = tpu.matmul %0, %1, %cst {dimension_numbers = #tpu.dot_dimension_numbers<[1], [0], [0], [1], [0, 0, 1, 1], [], []>} : vector<8x64xbf16>, vector<64x32xbf16>, vector<8x32xf32> -> vector<8x32xf32>
    %cst_3 = arith.constant dense<0.000000e+00> : vector<32xf32>
    %3 = vector.multi_reduction <add>, %2, %cst_3 [0] : vector<8x32xf32> to vector<32xf32>
    %4 = vector.shape_cast %3 : vector<32xf32> to vector<1x32xf32>
    %cst_4 = arith.constant 8.000000e+00 : f32
    %5 = vector.broadcast %cst_4 : f32 to vector<1x32xf32>
    %6 = arith.divf %4, %5 : vector<1x32xf32>
    %7 = arith.mulf %2, %2 : vector<8x32xf32>
    %cst_5 = arith.constant dense<0.000000e+00> : vector<32xf32>
    %8 = vector.multi_reduction <add>, %7, %cst_5 [0] : vector<8x32xf32> to vector<32xf32>
    %9 = vector.shape_cast %8 : vector<32xf32> to vector<1x32xf32>
    %cst_6 = arith.constant 8.000000e+00 : f32
    %10 = vector.broadcast %cst_6 : f32 to vector<1x32xf32>
    %11 = arith.divf %9, %10 : vector<1x32xf32>
    %12 = arith.mulf %6, %6 : vector<1x32xf32>
    %13 = arith.subf %11, %12 : vector<1x32xf32>
    %cst_7 = arith.constant 0.000000e+00 : f32
    %14 = vector.broadcast %cst_7 : f32 to vector<1x32xf32>
    %15 = arith.maximumf %13, %14 : vector<1x32xf32>
    %c0_8 = arith.constant 0 : index
    %c0_9 = arith.constant 0 : index
    %16 = vector.load %arg3[%c0_8, %c0_9] : memref<2x32xf32, #tpu.memory_space<vmem>>, vector<1x32xf32>
    %cst_10 = arith.constant 9.99999974E-6 : f32
    %17 = vector.broadcast %cst_10 : f32 to vector<1x32xf32>
    %18 = arith.addf %15, %17 : vector<1x32xf32>
    %19 = math.rsqrt %18 : vector<1x32xf32>
    %20 = arith.mulf %16, %19 : vector<1x32xf32>
    %c1 = arith.constant 1 : index
    %c0_11 = arith.constant 0 : index
    %21 = vector.load %arg3[%c1, %c0_11] : memref<2x32xf32, #tpu.memory_space<vmem>>, vector<1x32xf32>
    %22 = arith.mulf %6, %20 : vector<1x32xf32>
    %23 = arith.subf %21, %22 : vector<1x32xf32>
    %24 = vector.broadcast %20 : vector<1x32xf32> to vector<8x32xf32>
    %25 = arith.mulf %2, %24 : vector<8x32xf32>
    %26 = vector.broadcast %23 : vector<1x32xf32> to vector<8x32xf32>
    %27 = arith.addf %25, %26 : vector<8x32xf32>
    %cst_12 = arith.constant 0.000000e+00 : f32
    %28 = vector.broadcast %cst_12 : f32 to vector<8x32xf32>
    %29 = arith.maximumf %27, %28 : vector<8x32xf32>
    %30 = arith.truncf %29 : vector<8x32xf32> to vector<8x32xbf16>
    %c0_13 = arith.constant 0 : index
    %c0_14 = arith.constant 0 : index
    %31 = vector.load %arg4[%c0_13, %c0_14] : memref<8x32xbf16, #tpu.memory_space<vmem>>, vector<8x32xbf16>
    tpu.vector_store %arg4[%c0_13, %c0_14], %30 {strides = array<i32>} : memref<8x32xbf16, #tpu.memory_space<vmem>>, vector<8x32xbf16>,
    return
  }
  func.func @transform_0(%arg0: i32) -> (i32, i32) {
    %c0_i32 = arith.constant 0 : i32
    %c0_i32_0 = arith.constant 0 : i32
    %c0_i32_1 = arith.constant 0 : i32
    return %c0_i32, %c0_i32_0 : i32, i32
  }
  func.func @transform_1(%arg0: i32) -> (i32, i32) {
    %c0_i32 = arith.constant 0 : i32
    %c0_i32_0 = arith.constant 0 : i32
    return %c0_i32, %arg0 : i32, i32
  }
  func.func @transform_2(%arg0: i32) -> (i32, i32) {
    %c0_i32 = arith.constant 0 : i32
    %c0_i32_0 = arith.constant 0 : i32
    return %c0_i32, %arg0 : i32, i32
  }
  func.func @transform_3(%arg0: i32) -> (i32, i32) {
    %c0_i32 = arith.constant 0 : i32
    %c0_i32_0 = arith.constant 0 : i32
    return %c0_i32, %arg0 : i32, i32
  }
}

</mosaic_0001>

<llo_original>
// kernel: tpu_custom_call.1
$region0: #{tpu_custom_call.1}
  #allocation0 [shape = 'u32[]', space=smem, size = 0x4, offset = 0x4, fixed_abs, tag = 'smem constant byte address 0x4 - core index']
  #allocation1 [shape = 'u32[144,128]{1,0:T(1,128)}', space=vmem, size = 0x12000, scoped, tag = 'internal scratch']
  %s0 = inlined_call_operand.vmem [shape: bf16[8,64], index: 0, kind: input, shape index: {}]
  %s1 = inlined_call_operand.vmem [shape: bf16[64,32], index: 1, kind: input, shape index: {}]
  %s2 = inlined_call_operand.vmem [shape: f32[2,32], index: 2, kind: input, shape index: {}]
  %s3 = inlined_call_operand.hbm [shape: bf16[8,32], index: 3, kind: output, shape index: {}]
  %s4 = sld [smem:[#allocation0]]
  $region22: #{tpu_custom_call.1} parent=0
    _
  %s6 = ssub.s32 1, %s4
  %s7 = scalar_select 0, %s6, %s4
  $region1: #{tpu_custom_call.1} parent=0
    #allocation2 [shape = 'u8[2048]{0}', space=vmem, size = 0x800, scoped, tag = 'output window, operand 0, single buffered']
    #allocation3 [shape = 's32[1]{0}', space=sflag, size = 0x4, scoped, tag = 'scoped memory for tpu_custom_call.1']
    %8 = vsyncpa [#allocation3], 0
    // Predicated region
    $region2: #{tpu_custom_call.1} parent=1 // pred_check
      _
    $region3: #{tpu_custom_call.1} parent=1 // pred_check_branch
      %10 = sbr.rel (0) target = $region5
    $region4: #{tpu_custom_call.1} parent=1 // pred_region
      _
    $region5: #{tpu_custom_call.1} parent=1 // pred_fallthru
      _
    // Predicated region
    $region6: #{tpu_custom_call.1} parent=1 // pred_check
      _
    $region7: #{tpu_custom_call.1} parent=1 // pred_check_branch
      %12 = sbr.rel (0) target = $region9
    $region8: #{tpu_custom_call.1} parent=1 // pred_region
      _
    $region9: #{tpu_custom_call.1} parent=1 // pred_fallthru
      _
    // Predicated region
    $region10: #{tpu_custom_call.1} parent=1 // pred_check
      _
    $region11: #{tpu_custom_call.1} parent=1 // pred_check_branch
      %14 = sbr.rel (0) target = $region13
    $region12: #{tpu_custom_call.1} parent=1 // pred_region
      _
    $region13: #{tpu_custom_call.1} parent=1 // pred_fallthru
      _
    %v16 = vld [vmem:[%s0] sm:$0xf]
    %v17 = vld [vmem:[%s1] sm:$0xf]
    %v18 = vld [vmem:[%s1 + $0x4] sm:$0xf]
    %v19 = vld [vmem:[%s1 + $0x8] sm:$0xf]
    %v20 = vld [vmem:[%s1 + $0xc] sm:$0xf]
    %v21 = vld [vmem:[%s1 + $0x10] sm:$0xf]
    %v22 = vld [vmem:[%s1 + $0x14] sm:$0xf]
    %v23 = vld [vmem:[%s1 + $0x18] sm:$0xf]
    %v24 = vld [vmem:[%s1 + $0x1c] sm:$0xf]
    %v33 = vunpack.c.l.b16 %v17
    %v34 = vunpack.c.l.b16 %v18
    %v35 = vunpack.c.l.b16 %v19
    %v36 = vunpack.c.l.b16 %v20
    %v37 = vunpack.c.l.b16 %v21
    %v38 = vunpack.c.l.b16 %v22
    %v39 = vunpack.c.l.b16 %v23
    %v40 = vunpack.c.l.b16 %v24
    %v41 = vpack.c.b16 %v34, %v33
    %v42 = vpack.c.b16 %v36, %v35
    %v43 = vpack.c.b16 %v38, %v37
    %v44 = vpack.c.b16 %v40, %v39
    %vm49 = vcmask 523264
    %v51 = vsel %vm49, %v16, 0
    %53 = vmatprep.subr.bf16.mxu0 0
    %54 = vmatpush1.bf16.msra.mxu0 %v41
    %55 = vmatprep.subr.bf16.mxu0 0
    %56 = vmatpush1.bf16.msra.mxu0 %v42
    %57 = vmatprep.subr.bf16.mxu0 0
    %58 = vmatpush1.bf16.msra.mxu0 %v43
    %59 = vmatprep.subr.bf16.mxu0 0
    %60 = vmatpush1.bf16.msra.mxu0 %v44
    %61 = vmatprep.subr.bf16.mxu0 0
    %62 = vmatpush1.bf16.msra.mxu0 0
    %63 = vmatprep.subr.bf16.mxu0 0
    %64 = vmatpush1.bf16.msra.mxu0 0
    %65 = vmatprep.subr.bf16.mxu0 0
    %66 = vmatpush1.bf16.msra.mxu0 0
    %67 = vmatprep.subr.bf16.mxu0 0
    %68 = vmatpush1.bf16.msra.mxu0 0
    %69 = vmatprep.subr.bf16.mxu0 0
    %70 = vmatpush1.bf16.msra.mxu0 0
    %71 = vmatprep.subr.bf16.mxu0 0
    %72 = vmatpush1.bf16.msra.mxu0 0
    %73 = vmatprep.subr.bf16.mxu0 0
    %74 = vmatpush1.bf16.msra.mxu0 0
    %75 = vmatprep.subr.bf16.mxu0 0
    %76 = vmatpush1.bf16.msra.mxu0 0
    %77 = vmatprep.subr.bf16.mxu0 0
    %78 = vmatpush1.bf16.msra.mxu0 0
    %79 = vmatprep.subr.bf16.mxu0 0
    %80 = vmatpush1.bf16.msra.mxu0 0
    %81 = vmatprep.subr.bf16.mxu0 0
    %82 = vmatpush1.bf16.msra.mxu0 0
    %83 = vmatprep.subr.bf16.mxu0 0
    %84 = vmatpush1.bf16.msra.mxu0 0
    %85 = vmatprep.mubr.bf16.mxu0 0
    %86 = vmatmul.mubr.bf16.gmra.mrb[0].mxu0 %v51
    %v87 = vpop.f32.mrb[0].mxu0
    %v88 = vadd.f32 0.0, %v87
    %v89 = vpop.f32.mrb[0].mxu0
    %v90 = vpop.f32.mrb[0].mxu0
    %v91 = vpop.f32.mrb[0].mxu0
    %92 = vdwg.mxu0
    %vm93 = vcmask 261120
    %v94 = vsel %vm93, %v88, 0.0
    %v95 = vrot.slane %v94, 4
    %v96 = vadd.f32 %v94, %v95
    %v97 = vrot.slane %v96, 2
    %v98 = vadd.f32 %v96, %v97
    %v99 = vrot.slane %v98, 1
    %v100 = vadd.f32 %v98, %v99
    %v101 = vrcp.pop 8.0
    %v102 = vmul.f32 %v100, %v101
    %v103 = vmul.f32 %v88, %v88
    %v104 = vsel %vm93, %v103, 0.0
    %v105 = vrot.slane %v104, 4
    %v106 = vadd.f32 %v104, %v105
    %v107 = vrot.slane %v106, 2
    %v108 = vadd.f32 %v106, %v107
    %v109 = vrot.slane %v108, 1
    %v110 = vadd.f32 %v108, %v109
    %v111 = vmul.f32 %v110, %v101
    %v112 = vmul.f32 %v102, %v102
    %v113 = vsub.f32 %v111, %v112
    %v114 = vmax.f32 %v113, 0.0
    %v115 = vld [vmem:[%s2] sm:$0x1]
    %v116 = vadd.f32 %v114, 1e-05
    %v117 = vrsqrt.pop %v116
    %v118 = vmul.f32 %v115, %v117
    %v119 = vld [vmem:[%s2 + $0x1] sm:$0x1]
    %v120 = vmul.f32 %v102, %v118
    %v121 = vsub.f32 %v119, %v120
    %v122 = vlaneseq
    %v123 = vshrl.u32 %v122, 7
    %v124 = vsub.s32 0, %v123
    %v125 = vrot.slane %v118, %v124
    %v126 = vmul.f32 %v88, %v125
    %v127 = vlaneseq
    %v128 = vshrl.u32 %v127, 7
    %v129 = vsub.s32 0, %v128
    %v130 = vrot.slane %v121, %v129
    %v131 = vadd.f32 %v126, %v130
    %v132 = vmax.f32 %v131, 0.0
    %v133 = vpack.c.bf16 %v132, %v132
    %vm134 = vcmask 257024
    %135 = vst.msk [vmem:[#allocation2] sm:$0xf] %vm134, %v133
    // Predicated region
    $region14: #{tpu_custom_call.1} parent=1 // pred_check
      _
    $region15: #{tpu_custom_call.1} parent=1 // pred_check_branch
      %137 = sbr.rel (0) target = $region17
    $region16: #{tpu_custom_call.1} parent=1 // pred_region
      %s139 = ssub.s32 64, 64
      %140 = vsyncadd [#allocation3], %s139
      %s142 = sshll.u32 [#allocation2], 4
      %s143 = int_to_ptr.vmem [resolvable:$true] %s142
      %145 = dma.vmem_to_hbm [thread:$0]  %s143, 64, %s3, [#allocation3]
    $region17: #{tpu_custom_call.1} parent=1 // pred_fallthru
      _
    // Predicated region
    $region18: #{tpu_custom_call.1} parent=1 // pred_check
      _
    $region19: #{tpu_custom_call.1} parent=1 // pred_check_branch
      %147 = sbr.rel (0) target = $region21
    $region20: #{tpu_custom_call.1} parent=1 // pred_region
      %148 = dma.done [#allocation3], 64
    $region21: #{tpu_custom_call.1} parent=1 // pred_fallthru
      _
    %149 = vsyncpa [#allocation3], 1

</llo_original>
